<compile_context>
chip_gen: v5e
topology: v5e:2x2
jax: 0.10.0
libtpu: 0.0.40
codegen_flags: <defaults>
</compile_context>

<pallas_src>
import jax
import jax.numpy as jnp
from jax.experimental import pallas as pl
from jax.experimental.pallas import tpu as pltpu


def mlp_kernel(x_ref,
               w1_ref, b1_ref,
               w2_ref, b2_ref,
               w3_ref, b3_ref,
               w4_ref, b4_ref,
               o_ref):
    # x arrives f32 from HBM; cast to bf16 only here (no extra wrapper pass /
    # HBM round-trip).  All dots accumulate in f32 on the MXU; bias + ReLU
    # stay f32 on the VPU (v5e-safe).
    xb = x_ref[...].astype(w1_ref.dtype)

    # Layer 1: block-diag Linear(G*D, G*20) + ReLU.
    h = jnp.dot(xb, w1_ref[...], preferred_element_type=jnp.float32)
    h = jnp.maximum(h + b1_ref[...], 0.0)

    # Layer 2: block-diag Linear(G*20, G*10) + ReLU.
    h = jnp.dot(h.astype(w2_ref.dtype), w2_ref[...],
                preferred_element_type=jnp.float32)
    h = jnp.maximum(h + b2_ref[...], 0.0)

    # Layer 3: block-diag Linear(G*10, G*5) + ReLU.
    h = jnp.dot(h.astype(w3_ref.dtype), w3_ref[...],
                preferred_element_type=jnp.float32)
    h = jnp.maximum(h + b3_ref[...], 0.0)

    # Output layer: block-diag Linear(G*5, G).  With lane packing the result
    # is already a (rows, G) tile -- no sublane->lane relayout needed.
    h = jnp.dot(h.astype(w4_ref.dtype), w4_ref[...],
                preferred_element_type=jnp.float32)
    o_ref[...] = (h + b4_ref[...]).astype(o_ref.dtype)


def _round_up(a, m):
    return ((a + m - 1) // m) * m


def _pick_group(batch):
    # Largest G <= 6 that divides the batch -> copy-free (B,D)->(B/G, G*D)
    # reshape and zero padding.  Widest hidden is 20, so G=6 -> 120/128 lanes.
    for g in (6, 5, 4, 3, 2):
        if batch % g == 0:
            return g
    return 1


def _pick_rows_per_tile(n_rows, row_bytes):
    """Packed rows (each = G original samples) per grid step."""
    target_tile_bytes = 2 << 20   # ~2 MiB of f32 x per step: amortizes the
                                  # ~0.35 us fixed per-grid-step cost while
                                  # double-buffered x + f32 intermediates stay
                                  # well under v5e's 16 MiB scoped-VMEM default.
    rpt = max(8, (target_tile_bytes // max(row_bytes, 1)) // 8 * 8)
    # v7x megacore: if the batch is big enough to split into two decent tiles,
    # do so, so both TensorCores get work via the "parallel" batch axis.
    if n_rows >= 128:
        rpt = min(rpt, _round_up((n_rows + 1) // 2, 8))
    if rpt >= n_rows:
        rpt = n_rows              # single tile: block == full array dims
    return rpt


def mlp_forward(x, params, *, compute_dtype=jnp.bfloat16):
    """x: (B, D) float32.  params: list of (W_t, b) with W_t shape (in, out)."""
    B, D = x.shape
    (w1, b1), (w2, b2), (w3, b3), (w4, b4) = params

    G = _pick_group(B)
    n_rows = B // G                    # packed rows; exact since G | B
    xk = x.reshape(n_rows, G * D)      # contiguous -> free; stays f32 in HBM

    # Block-diagonal weights (kron(I_G, W)) in bf16; biases tiled G x (f32).
    eye = jnp.eye(G, dtype=jnp.float32)
    w1c = jnp.kron(eye, w1).astype(compute_dtype)      # (G*D,  G*20)
    w2c = jnp.kron(eye, w2).astype(compute_dtype)      # (G*20, G*10)
    w3c = jnp.kron(eye, w3).astype(compute_dtype)      # (G*10, G*5)
    w4c = jnp.kron(eye, w4).astype(compute_dtype)      # (G*5,  G)
    b1t = jnp.tile(b1, (1, G)).astype(jnp.float32)
    b2t = jnp.tile(b2, (1, G)).astype(jnp.float32)
    b3t = jnp.tile(b3, (1, G)).astype(jnp.float32)
    b4t = jnp.tile(b4, (1, G)).astype(jnp.float32)

    rpt = _pick_rows_per_tile(n_rows, G * D * 4)
    n_tiles = pl.cdiv(n_rows, rpt)     # ragged last tile: Pallas partial block

    def full_spec(arr):
        # Tiny weights/biases: whole-array blocks, VMEM-resident every step.
        return pl.BlockSpec(arr.shape, lambda i: (0,) * arr.ndim)

    out = pl.pallas_call(
        mlp_kernel,
        out_shape=jax.ShapeDtypeStruct((n_rows, G), jnp.float32),
        grid_spec=pltpu.PrefetchScalarGridSpec(
            num_scalar_prefetch=0,
            grid=(n_tiles,),
            in_specs=[
                # Packed x tile (f32): only the batch axis is tiled.  Default
                # double buffering hides this DMA under the compute at this
                # tile size; only add pl.Buffered(3) if a profile shows
                # exposed DMA (it also costs extra VMEM).
                pl.BlockSpec((rpt, G * D), lambda i: (i, 0)),
                full_spec(w1c), full_spec(b1t),
                full_spec(w2c), full_spec(b2t),
                full_spec(w3c), full_spec(b3t),
                full_spec(w4c), full_spec(b4t),
            ],
            out_specs=pl.BlockSpec((rpt, G), lambda i: (i, 0)),
        ),
        compiler_params=pltpu.CompilerParams(
            dimension_semantics=("parallel",),
        ),
    )(xk, w1c, b1t, w2c, b2t, w3c, b3t, w4c, b4t)

    # Each output row holds G consecutive samples, so a row-major flatten
    # restores the original sample order.
    return out.reshape(B, 1)


def init_linear(key, fan_in, fan_out):
    """Mimics torch.nn.Linear default init (U(-1/sqrt(in), 1/sqrt(in))).
    Returns W transposed to (fan_in, fan_out) and bias shaped (1, fan_out)."""
    kw, kb = jax.random.split(key)
    bound = 1.0 / jnp.sqrt(jnp.float32(fan_in))
    w_t = jax.random.uniform(kw, (fan_in, fan_out), jnp.float32, -bound, bound)
    b = jax.random.uniform(kb, (1, fan_out), jnp.float32, -bound, bound)
    return w_t, b


def mlp_reference(x, params, compute_dtype=jnp.bfloat16):
    """Pure-JAX reference mirroring the kernel's bf16-input / f32-accumulate math."""
    (w1, b1), (w2, b2), (w3, b3), (w4, b4) = params
    c = lambda a: a.astype(compute_dtype).astype(jnp.float32)
    h = jnp.maximum(c(x) @ c(w1) + b1, 0.0)
    h = jnp.maximum(c(h) @ c(w2) + b2, 0.0)
    h = jnp.maximum(c(h) @ c(w3) + b3, 0.0)
    return c(h) @ c(w4) + b4


if __name__ == "__main__":
    key = jax.random.PRNGKey(0)
    input_dim = 32
    batch = 16

    k_x, k1, k2, k3, k4 = jax.random.split(key, 5)
    x = jax.random.normal(k_x, (batch, input_dim), jnp.float32)

    params = [
        init_linear(k1, input_dim, 20),
        init_linear(k2, 20, 10),
        init_linear(k3, 10, 5),
        init_linear(k4, 5, 1),
    ]

    out = mlp_forward(x, params)
    out = jax.block_until_ready(out)

    ref = mlp_reference(x, params)
    assert out.shape == (batch, 1)
    # NOTE: the reference mirrors the kernel's bf16-rounded inputs/weights, so
    # this checks the kernel plumbing; vs. a pure-f32 PyTorch forward the
    # result differs by bf16 rounding (~1e-2 relative), accepted by design.
    assert jnp.allclose(out, ref, atol=1e-2, rtol=1e-2), "mismatch vs reference"

    print("KERNEL_OK")
</pallas_src>

<mosaic_0001>
module attributes {stable_mosaic.version = 11 : i64} {
  func.func @mlp_kernel(%arg0: i32, %arg1: memref<4x128xf32, #tpu.memory_space<vmem>>, %arg2: memref<128x80xbf16, #tpu.memory_space<vmem>>, %arg3: memref<1x80xf32, #tpu.memory_space<vmem>>, %arg4: memref<80x40xbf16, #tpu.memory_space<vmem>>, %arg5: memref<1x40xf32, #tpu.memory_space<vmem>>, %arg6: memref<40x20xbf16, #tpu.memory_space<vmem>>, %arg7: memref<1x20xf32, #tpu.memory_space<vmem>>, %arg8: memref<20x4xbf16, #tpu.memory_space<vmem>>, %arg9: memref<1x4xf32, #tpu.memory_space<vmem>>, %arg10: memref<4x4xf32, #tpu.memory_space<vmem>>) attributes {dimension_semantics = [#tpu.dimension_semantics<parallel>], iteration_bounds = array<i64: 1>, scalar_prefetch = 0 : i64, scratch_operands = 0 : i64, tpu.core_type = #tpu.core_type<tc>, window_params = [{transform_indices = @transform_0, window_bounds = array<i64: 4, 128>}, {pipeline_mode = #tpu.pipeline_mode<synchronous>, transform_indices = @transform_1, window_bounds = array<i64: 128, 80>}, {pipeline_mode = #tpu.pipeline_mode<synchronous>, transform_indices = @transform_2, window_bounds = array<i64: 1, 80>}, {pipeline_mode = #tpu.pipeline_mode<synchronous>, transform_indices = @transform_3, window_bounds = array<i64: 80, 40>}, {pipeline_mode = #tpu.pipeline_mode<synchronous>, transform_indices = @transform_4, window_bounds = array<i64: 1, 40>}, {pipeline_mode = #tpu.pipeline_mode<synchronous>, transform_indices = @transform_5, window_bounds = array<i64: 40, 20>}, {pipeline_mode = #tpu.pipeline_mode<synchronous>, transform_indices = @transform_6, window_bounds = array<i64: 1, 20>}, {pipeline_mode = #tpu.pipeline_mode<synchronous>, transform_indices = @transform_7, window_bounds = array<i64: 20, 4>}, {pipeline_mode = #tpu.pipeline_mode<synchronous>, transform_indices = @transform_8, window_bounds = array<i64: 1, 4>}, {transform_indices = @transform_9, window_bounds = array<i64: 4, 4>}]} {
    %c0 = arith.constant 0 : index
    %c0_0 = arith.constant 0 : index
    %0 = vector.load %arg1[%c0, %c0_0] : memref<4x128xf32, #tpu.memory_space<vmem>>, vector<4x128xf32>
    %1 = arith.truncf %0 : vector<4x128xf32> to vector<4x128xbf16>
    %c0_1 = arith.constant 0 : index
    %c0_2 = arith.constant 0 : index
    %2 = vector.load %arg2[%c0_1, %c0_2] : memref<128x80xbf16, #tpu.memory_space<vmem>>, vector<128x80xbf16>
    %cst = arith.constant dense<0.000000e+00> : vector<4x80xf32>
    %3 = tpu.matmul %1, %2, %cst {dimension_numbers = #tpu.dot_dimension_numbers<[1], [0], [0], [1], [0, 0, 1, 1], [], []>} : vector<4x128xbf16>, vector<128x80xbf16>, vector<4x80xf32> -> vector<4x80xf32>
    %c0_3 = arith.constant 0 : index
    %c0_4 = arith.constant 0 : index
    %4 = vector.load %arg3[%c0_3, %c0_4] : memref<1x80xf32, #tpu.memory_space<vmem>>, vector<1x80xf32>
    %5 = vector.broadcast %4 : vector<1x80xf32> to vector<4x80xf32>
    %6 = arith.addf %3, %5 : vector<4x80xf32>
    %cst_5 = arith.constant 0.000000e+00 : f32
    %7 = vector.broadcast %cst_5 : f32 to vector<4x80xf32>
    %8 = arith.maximumf %6, %7 : vector<4x80xf32>
    %9 = arith.truncf %8 : vector<4x80xf32> to vector<4x80xbf16>
    %c0_6 = arith.constant 0 : index
    %c0_7 = arith.constant 0 : index
    %10 = vector.load %arg4[%c0_6, %c0_7] : memref<80x40xbf16, #tpu.memory_space<vmem>>, vector<80x40xbf16>
    %cst_8 = arith.constant dense<0.000000e+00> : vector<4x40xf32>
    %11 = tpu.matmul %9, %10, %cst_8 {dimension_numbers = #tpu.dot_dimension_numbers<[1], [0], [0], [1], [0, 0, 1, 1], [], []>} : vector<4x80xbf16>, vector<80x40xbf16>, vector<4x40xf32> -> vector<4x40xf32>
    %c0_9 = arith.constant 0 : index
    %c0_10 = arith.constant 0 : index
    %12 = vector.load %arg5[%c0_9, %c0_10] : memref<1x40xf32, #tpu.memory_space<vmem>>, vector<1x40xf32>
    %13 = vector.broadcast %12 : vector<1x40xf32> to vector<4x40xf32>
    %14 = arith.addf %11, %13 : vector<4x40xf32>
    %cst_11 = arith.constant 0.000000e+00 : f32
    %15 = vector.broadcast %cst_11 : f32 to vector<4x40xf32>
    %16 = arith.maximumf %14, %15 : vector<4x40xf32>
    %17 = arith.truncf %16 : vector<4x40xf32> to vector<4x40xbf16>
    %c0_12 = arith.constant 0 : index
    %c0_13 = arith.constant 0 : index
    %18 = vector.load %arg6[%c0_12, %c0_13] : memref<40x20xbf16, #tpu.memory_space<vmem>>, vector<40x20xbf16>
    %cst_14 = arith.constant dense<0.000000e+00> : vector<4x20xf32>
    %19 = tpu.matmul %17, %18, %cst_14 {dimension_numbers = #tpu.dot_dimension_numbers<[1], [0], [0], [1], [0, 0, 1, 1], [], []>} : vector<4x40xbf16>, vector<40x20xbf16>, vector<4x20xf32> -> vector<4x20xf32>
    %c0_15 = arith.constant 0 : index
    %c0_16 = arith.constant 0 : index
    %20 = vector.load %arg7[%c0_15, %c0_16] : memref<1x20xf32, #tpu.memory_space<vmem>>, vector<1x20xf32>
    %21 = vector.broadcast %20 : vector<1x20xf32> to vector<4x20xf32>
    %22 = arith.addf %19, %21 : vector<4x20xf32>
    %cst_17 = arith.constant 0.000000e+00 : f32
    %23 = vector.broadcast %cst_17 : f32 to vector<4x20xf32>
    %24 = arith.maximumf %22, %23 : vector<4x20xf32>
    %25 = arith.truncf %24 : vector<4x20xf32> to vector<4x20xbf16>
    %c0_18 = arith.constant 0 : index
    %c0_19 = arith.constant 0 : index
    %26 = vector.load %arg8[%c0_18, %c0_19] : memref<20x4xbf16, #tpu.memory_space<vmem>>, vector<20x4xbf16>
    %cst_20 = arith.constant dense<0.000000e+00> : vector<4x4xf32>
    %27 = tpu.matmul %25, %26, %cst_20 {dimension_numbers = #tpu.dot_dimension_numbers<[1], [0], [0], [1], [0, 0, 1, 1], [], []>} : vector<4x20xbf16>, vector<20x4xbf16>, vector<4x4xf32> -> vector<4x4xf32>
    %c0_21 = arith.constant 0 : index
    %c0_22 = arith.constant 0 : index
    %28 = vector.load %arg9[%c0_21, %c0_22] : memref<1x4xf32, #tpu.memory_space<vmem>>, vector<1x4xf32>
    %29 = vector.broadcast %28 : vector<1x4xf32> to vector<4x4xf32>
    %30 = arith.addf %27, %29 : vector<4x4xf32>
    %c0_23 = arith.constant 0 : index
    %c0_24 = arith.constant 0 : index
    %31 = vector.load %arg10[%c0_23, %c0_24] : memref<4x4xf32, #tpu.memory_space<vmem>>, vector<4x4xf32>
    tpu.vector_store %arg10[%c0_23, %c0_24], %30 {strides = array<i32>} : memref<4x4xf32, #tpu.memory_space<vmem>>, vector<4x4xf32>,
    return
  }
  func.func @transform_0(%arg0: i32) -> (i32, i32) {
    %c0_i32 = arith.constant 0 : i32
    %c0_i32_0 = arith.constant 0 : i32
    return %arg0, %c0_i32 : i32, i32
  }
  func.func @transform_1(%arg0: i32) -> (i32, i32) {
    %c0_i32 = arith.constant 0 : i32
    %c0_i32_0 = arith.constant 0 : i32
    %c0_i32_1 = arith.constant 0 : i32
    return %c0_i32, %c0_i32_0 : i32, i32
  }
  func.func @transform_2(%arg0: i32) -> (i32, i32) {
    %c0_i32 = arith.constant 0 : i32
    %c0_i32_0 = arith.constant 0 : i32
    %c0_i32_1 = arith.constant 0 : i32
    return %c0_i32, %c0_i32_0 : i32, i32
  }
  func.func @transform_3(%arg0: i32) -> (i32, i32) {
    %c0_i32 = arith.constant 0 : i32
    %c0_i32_0 = arith.constant 0 : i32
    %c0_i32_1 = arith.constant 0 : i32
    return %c0_i32, %c0_i32_0 : i32, i32
  }
  func.func @transform_4(%arg0: i32) -> (i32, i32) {
    %c0_i32 = arith.constant 0 : i32
    %c0_i32_0 = arith.constant 0 : i32
    %c0_i32_1 = arith.constant 0 : i32
    return %c0_i32, %c0_i32_0 : i32, i32
  }
  func.func @transform_5(%arg0: i32) -> (i32, i32) {
    %c0_i32 = arith.constant 0 : i32
    %c0_i32_0 = arith.constant 0 : i32
    %c0_i32_1 = arith.constant 0 : i32
    return %c0_i32, %c0_i32_0 : i32, i32
  }
  func.func @transform_6(%arg0: i32) -> (i32, i32) {
    %c0_i32 = arith.constant 0 : i32
    %c0_i32_0 = arith.constant 0 : i32
    %c0_i32_1 = arith.constant 0 : i32
    return %c0_i32, %c0_i32_0 : i32, i32
  }
  func.func @transform_7(%arg0: i32) -> (i32, i32) {
    %c0_i32 = arith.constant 0 : i32
    %c0_i32_0 = arith.constant 0 : i32
    %c0_i32_1 = arith.constant 0 : i32
    return %c0_i32, %c0_i32_0 : i32, i32
  }
  func.func @transform_8(%arg0: i32) -> (i32, i32) {
    %c0_i32 = arith.constant 0 : i32
    %c0_i32_0 = arith.constant 0 : i32
    %c0_i32_1 = arith.constant 0 : i32
    return %c0_i32, %c0_i32_0 : i32, i32
  }
  func.func @transform_9(%arg0: i32) -> (i32, i32) {
    %c0_i32 = arith.constant 0 : i32
    %c0_i32_0 = arith.constant 0 : i32
    return %arg0, %c0_i32 : i32, i32
  }
}

</mosaic_0001>

<llo_original>
// kernel: tpu_custom_call.1
$region0: #{tpu_custom_call.1}
  #allocation0 [shape = 'u32[]', space=smem, size = 0x4, offset = 0x4, fixed_abs, tag = 'smem constant byte address 0x4 - core index']
  #allocation1 [shape = 'u32[72,128]{1,0:T(1,128)}', space=vmem, size = 0x9000, scoped, tag = 'internal scratch']
  %s0 = inlined_call_operand.vmem [shape: f32[4,128], index: 0, kind: input, shape index: {}]
  %s1 = inlined_call_operand.vmem [shape: bf16[128,80], index: 1, kind: input, shape index: {}]
  %s2 = inlined_call_operand.vmem [shape: f32[1,80], index: 2, kind: input, shape index: {}]
  %s3 = inlined_call_operand.vmem [shape: bf16[80,40], index: 3, kind: input, shape index: {}]
  %s4 = inlined_call_operand.vmem [shape: f32[1,40], index: 4, kind: input, shape index: {}]
  %s5 = inlined_call_operand.vmem [shape: bf16[40,20], index: 5, kind: input, shape index: {}]
  %s6 = inlined_call_operand.vmem [shape: f32[1,20], index: 6, kind: input, shape index: {}]
  %s7 = inlined_call_operand.vmem [shape: bf16[20,4], index: 7, kind: input, shape index: {}]
  %s8 = inlined_call_operand.vmem [shape: f32[1,4], index: 8, kind: input, shape index: {}]
  %s9 = inlined_call_operand.hbm [shape: f32[4,4], index: 9, kind: output, shape index: {}]
  %s10 = sld [smem:[#allocation0]]
  $region46: #{tpu_custom_call.1} parent=0
    _
  %s12 = ssub.s32 1, %s10
  %s13 = scalar_select 0, %s12, %s10
  $region1: #{tpu_custom_call.1} parent=0
    #allocation2 [shape = 'u8[2048]{0}', space=vmem, size = 0x800, scoped, tag = 'output window, operand 0, single buffered']
    #allocation3 [shape = 's32[1]{0}', space=sflag, size = 0x4, scoped, tag = 'scoped memory for tpu_custom_call.1']
    %14 = vsyncpa [#allocation3], 0
    // Predicated region
    $region2: #{tpu_custom_call.1} parent=1 // pred_check
      _
    $region3: #{tpu_custom_call.1} parent=1 // pred_check_branch
      %16 = sbr.rel (0) target = $region5
    $region4: #{tpu_custom_call.1} parent=1 // pred_region
      _
    $region5: #{tpu_custom_call.1} parent=1 // pred_fallthru
      _
    // Predicated region
    $region6: #{tpu_custom_call.1} parent=1 // pred_check
      _
    $region7: #{tpu_custom_call.1} parent=1 // pred_check_branch
      %18 = sbr.rel (0) target = $region9
    $region8: #{tpu_custom_call.1} parent=1 // pred_region
      _
    $region9: #{tpu_custom_call.1} parent=1 // pred_fallthru
      _
    // Predicated region
    $region10: #{tpu_custom_call.1} parent=1 // pred_check
      _
    $region11: #{tpu_custom_call.1} parent=1 // pred_check_branch
      %20 = sbr.rel (0) target = $region13
    $region12: #{tpu_custom_call.1} parent=1 // pred_region
      _
    $region13: #{tpu_custom_call.1} parent=1 // pred_fallthru
      _
    // Predicated region
    $region14: #{tpu_custom_call.1} parent=1 // pred_check
      _
    $region15: #{tpu_custom_call.1} parent=1 // pred_check_branch
      %22 = sbr.rel (0) target = $region17
    $region16: #{tpu_custom_call.1} parent=1 // pred_region
      _
    $region17: #{tpu_custom_call.1} parent=1 // pred_fallthru
      _
    // Predicated region
    $region18: #{tpu_custom_call.1} parent=1 // pred_check
      _
    $region19: #{tpu_custom_call.1} parent=1 // pred_check_branch
      %24 = sbr.rel (0) target = $region21
    $region20: #{tpu_custom_call.1} parent=1 // pred_region
      _
    $region21: #{tpu_custom_call.1} parent=1 // pred_fallthru
      _
    // Predicated region
    $region22: #{tpu_custom_call.1} parent=1 // pred_check
      _
    $region23: #{tpu_custom_call.1} parent=1 // pred_check_branch
      %26 = sbr.rel (0) target = $region25
    $region24: #{tpu_custom_call.1} parent=1 // pred_region
      _
    $region25: #{tpu_custom_call.1} parent=1 // pred_fallthru
      _
    // Predicated region
    $region26: #{tpu_custom_call.1} parent=1 // pred_check
      _
    $region27: #{tpu_custom_call.1} parent=1 // pred_check_branch
      %28 = sbr.rel (0) target = $region29
    $region28: #{tpu_custom_call.1} parent=1 // pred_region
      _
    $region29: #{tpu_custom_call.1} parent=1 // pred_fallthru
      _
    // Predicated region
    $region30: #{tpu_custom_call.1} parent=1 // pred_check
      _
    $region31: #{tpu_custom_call.1} parent=1 // pred_check_branch
      %30 = sbr.rel (0) target = $region33
    $region32: #{tpu_custom_call.1} parent=1 // pred_region
      _
    $region33: #{tpu_custom_call.1} parent=1 // pred_fallthru
      _
    // Predicated region
    $region34: #{tpu_custom_call.1} parent=1 // pred_check
      _
    $region35: #{tpu_custom_call.1} parent=1 // pred_check_branch
      %32 = sbr.rel (0) target = $region37
    $region36: #{tpu_custom_call.1} parent=1 // pred_region
      _
    $region37: #{tpu_custom_call.1} parent=1 // pred_fallthru
      _
    %v34 = vld [vmem:[%s0] sm:$0xf]
    %v35 = vpack.c.bf16 %v34, %v34
    %v36 = vld [vmem:[%s1] sm:$0xf]
    %v37 = vld [vmem:[%s1 + $0x4] sm:$0xf]
    %v38 = vld [vmem:[%s1 + $0x8] sm:$0xf]
    %v39 = vld [vmem:[%s1 + $0xc] sm:$0xf]
    %v40 = vld [vmem:[%s1 + $0x10] sm:$0xf]
    %v41 = vld [vmem:[%s1 + $0x14] sm:$0xf]
    %v42 = vld [vmem:[%s1 + $0x18] sm:$0xf]
    %v43 = vld [vmem:[%s1 + $0x1c] sm:$0xf]
    %v44 = vld [vmem:[%s1 + $0x20] sm:$0xf]
    %v45 = vld [vmem:[%s1 + $0x24] sm:$0xf]
    %v46 = vld [vmem:[%s1 + $0x28] sm:$0xf]
    %v47 = vld [vmem:[%s1 + $0x2c] sm:$0xf]
    %v48 = vld [vmem:[%s1 + $0x30] sm:$0xf]
    %v49 = vld [vmem:[%s1 + $0x34] sm:$0xf]
    %v50 = vld [vmem:[%s1 + $0x38] sm:$0xf]
    %v51 = vld [vmem:[%s1 + $0x3c] sm:$0xf]
    %v52 = vld [vmem:[%s2] sm:$0x1]
    %v54 = vperm.slane %v52, 0
    %v72 = vunpack.c.l.b16 %v36
    %v73 = vunpack.c.l.b16 %v37
    %v74 = vunpack.c.l.b16 %v38
    %v75 = vunpack.c.l.b16 %v39
    %v76 = vunpack.c.l.b16 %v40
    %v77 = vunpack.c.l.b16 %v41
    %v78 = vunpack.c.l.b16 %v42
    %v79 = vunpack.c.l.b16 %v43
    %v80 = vunpack.c.l.b16 %v44
    %v81 = vunpack.c.l.b16 %v45
    %v82 = vunpack.c.l.b16 %v46
    %v83 = vunpack.c.l.b16 %v47
    %v84 = vunpack.c.l.b16 %v48
    %v85 = vunpack.c.l.b16 %v49
    %v86 = vunpack.c.l.b16 %v50
    %v87 = vunpack.c.l.b16 %v51
    %v88 = vpack.c.b16 %v73, %v72
    %v89 = vpack.c.b16 %v75, %v74
    %v90 = vpack.c.b16 %v77, %v76
    %v91 = vpack.c.b16 %v79, %v78
    %v92 = vpack.c.b16 %v81, %v80
    %v93 = vpack.c.b16 %v83, %v82
    %v94 = vpack.c.b16 %v85, %v84
    %v95 = vpack.c.b16 %v87, %v86
    %104 = vmatpush.bf16.msra.mxu0 %v95
    %105 = vmatpush.bf16.msra.mxu0 %v94
    %106 = vmatpush.bf16.msra.mxu0 %v93
    %107 = vmatpush.bf16.msra.mxu0 %v92
    %108 = vmatpush.bf16.msra.mxu0 %v91
    %109 = vmatpush.bf16.msra.mxu0 %v90
    %110 = vmatpush.bf16.msra.mxu0 %v89
    %111 = vmatpush.bf16.msra.mxu0 %v88
    %112 = vmatmul.bf16.gmra.mxu0 %v35
    %v113 = vpop.f32.mrf.mxu0
    %v114 = vadd.f32 %v54, %v113
    %v115 = vpop.f32.mrf.mxu0
    %116 = vdwg.mxu0
    %v117 = vmax.f32 %v114, 0.0
    %v118 = vpack.c.bf16 %v117, %v117
    %v119 = vld [vmem:[%s3] sm:$0xf]
    %v120 = vld [vmem:[%s3 + $0x4] sm:$0xf]
    %v121 = vld [vmem:[%s3 + $0x8] sm:$0xf]
    %v122 = vld [vmem:[%s3 + $0xc] sm:$0xf]
    %v123 = vld [vmem:[%s3 + $0x10] sm:$0xf]
    %v124 = vld [vmem:[%s3 + $0x14] sm:$0xf]
    %v125 = vld [vmem:[%s3 + $0x18] sm:$0xf]
    %v126 = vld [vmem:[%s3 + $0x1c] sm:$0xf]
    %v127 = vld [vmem:[%s3 + $0x20] sm:$0xf]
    %v128 = vld [vmem:[%s3 + $0x24] sm:$0xf]
    %v129 = vld [vmem:[%s4] sm:$0x1]
    %v131 = vperm.slane %v129, 0
    %v143 = vunpack.c.l.b16 %v119
    %v144 = vunpack.c.l.b16 %v120
    %v145 = vunpack.c.l.b16 %v121
    %v146 = vunpack.c.l.b16 %v122
    %v147 = vunpack.c.l.b16 %v123
    %v148 = vunpack.c.l.b16 %v124
    %v149 = vunpack.c.l.b16 %v125
    %v150 = vunpack.c.l.b16 %v126
    %v151 = vunpack.c.l.b16 %v127
    %v152 = vunpack.c.l.b16 %v128
    %v153 = vpack.c.b16 %v144, %v143
    %v154 = vpack.c.b16 %v146, %v145
    %v155 = vpack.c.b16 %v148, %v147
    %v156 = vpack.c.b16 %v150, %v149
    %v157 = vpack.c.b16 %v152, %v151
    %vm163 = vcmask 654336
    %v165 = vsel %vm163, %v118, 0
    %167 = vmatpush.bf16.msra.mxu0 0
    %168 = vmatpush.bf16.msra.mxu0 0
    %169 = vmatpush.bf16.msra.mxu0 0
    %170 = vmatpush.bf16.msra.mxu0 %v157
    %171 = vmatpush.bf16.msra.mxu0 %v156
    %172 = vmatpush.bf16.msra.mxu0 %v155
    %173 = vmatpush.bf16.msra.mxu0 %v154
    %174 = vmatpush.bf16.msra.mxu0 %v153
    %175 = vmatmul.bf16.gmra.mxu0 %v165
    %v176 = vpop.f32.mrf.mxu0
    %v177 = vadd.f32 %v131, %v176
    %v178 = vpop.f32.mrf.mxu0
    %179 = vdwg.mxu0
    %v180 = vmax.f32 %v177, 0.0
    %v181 = vpack.c.bf16 %v180, %v180
    %v182 = vld [vmem:[%s5] sm:$0xf]
    %v183 = vld [vmem:[%s5 + $0x4] sm:$0xf]
    %v184 = vld [vmem:[%s5 + $0x8] sm:$0xf]
    %v185 = vld [vmem:[%s5 + $0xc] sm:$0xf]
    %v186 = vld [vmem:[%s5 + $0x10] sm:$0xf]
    %v187 = vld [vmem:[%s6] sm:$0x1]
    %v189 = vperm.slane %v187, 0
    %v196 = vunpack.c.l.b16 %v182
    %v197 = vunpack.c.l.b16 %v183
    %v198 = vunpack.c.l.b16 %v184
    %v199 = vunpack.c.l.b16 %v185
    %v200 = vunpack.c.l.b16 %v186
    %v201 = vpack.c.b16 %v197, %v196
    %v202 = vpack.c.b16 %v199, %v198
    %v203 = vpack.c.b16 %v200, %v200
    %vm206 = vcmask 326656
    %v208 = vsel %vm206, %v181, 0
    %vm210 = vcmask 1043456
    %v212 = vsel %vm210, %v203, 0
    %214 = vmatpush.bf16.msra.mxu0 0
    %215 = vmatpush.bf16.msra.mxu0 0
    %216 = vmatpush.bf16.msra.mxu0 0
    %217 = vmatpush.bf16.msra.mxu0 0
    %218 = vmatpush.bf16.msra.mxu0 0
    %219 = vmatpush.bf16.msra.mxu0 %v212
    %220 = vmatpush.bf16.msra.mxu0 %v202
    %221 = vmatpush.bf16.msra.mxu0 %v201
    %222 = vmatmul.bf16.gmra.mxu0 %v208
    %v223 = vpop.f32.mrf.mxu0
    %v224 = vadd.f32 %v189, %v223
    %v225 = vpop.f32.mrf.mxu0
    %226 = vdwg.mxu0
    %v227 = vmax.f32 %v224, 0.0
    %v228 = vpack.c.bf16 %v227, %v227
    %v229 = vld [vmem:[%s7] sm:$0xf]
    %v230 = vld [vmem:[%s7 + $0x4] sm:$0xf]
    %v231 = vld [vmem:[%s7 + $0x8] sm:$0x3]
    %v232 = vld [vmem:[%s8] sm:$0x1]
    %v234 = vperm.slane %v232, 0
    %v239 = vunpack.c.l.b16 %v229
    %v240 = vunpack.c.l.b16 %v230
    %v241 = vunpack.c.l.b16 %v231
    %v242 = vpack.c.b16 %v240, %v239
    %v243 = vpack.c.b16 %v241, %v241
    %vm245 = vcmask 162816
    %v247 = vsel %vm245, %v228, 0
    %vm249 = vcmask 1041408
    %v251 = vsel %vm249, %v243, 0
    %253 = vmatpush.bf16.msra.mxu0 0
    %254 = vmatpush.bf16.msra.mxu0 0
    %255 = vmatpush.bf16.msra.mxu0 0
    %256 = vmatpush.bf16.msra.mxu0 0
    %257 = vmatpush.bf16.msra.mxu0 0
    %258 = vmatpush.bf16.msra.mxu0 0
    %259 = vmatpush.bf16.msra.mxu0 %v251
    %260 = vmatpush.bf16.msra.mxu0 %v242
    %261 = vmatmul.bf16.gmra.mxu0 %v247
    %v262 = vpop.f32.mrf.mxu0
    %v263 = vadd.f32 %v234, %v262
    %v264 = vpop.f32.mrf.mxu0
    %265 = vdwg.mxu0
    %vm266 = vcmask 27648
    %267 = vst.msk [vmem:[#allocation2] sm:$0xf] %vm266, %v263
    // Predicated region
    $region38: #{tpu_custom_call.1} parent=1 // pred_check
      _
    $region39: #{tpu_custom_call.1} parent=1 // pred_check_branch
      %269 = sbr.rel (0) target = $region41
    $region40: #{tpu_custom_call.1} parent=1 // pred_region
      %271 = vsyncadd [#allocation3], 0
      %s273 = sshll.u32 [#allocation2], 4
      %s274 = int_to_ptr.vmem [resolvable:$true] %s273
      %s275 = sshll.u32 %s9, 4
      %s276 = int_to_ptr.hbm [resolvable:$true] %s275
      %278 = dma.vmem_to_hbm [thread:$0]  %s274, 64, %s276, [#allocation3]
    $region41: #{tpu_custom_call.1} parent=1 // pred_fallthru
      _
    // Predicated region
    $region42: #{tpu_custom_call.1} parent=1 // pred_check
      _
    $region43: #{tpu_custom_call.1} parent=1 // pred_check_branch
      %280 = sbr.rel (0) target = $region45
    $region44: #{tpu_custom_call.1} parent=1 // pred_region
      %282 = dma.done [#allocation3], 64
    $region45: #{tpu_custom_call.1} parent=1 // pred_fallthru
      _
    %283 = vsyncpa [#allocation3], 1

</llo_original>
